<compile_context>
chip_gen: v7x
topology: tpu7x:2x2x1
jax: 0.10.0
libtpu: 0.0.40
codegen_flags: <defaults>
</compile_context>

<pallas_src>
import jax
import jax.numpy as jnp
from jax import lax
from jax.experimental import pallas as pl
from jax.experimental.pallas import tpu as pltpu


def _seq_attn_kernel(x_ref, y_ref, mask_ref, wt_ref, b_ref, out_ref):
    # x_ref:   (BB, L1p, Hp) bf16
    # y_ref:   (BB, L2p, Hp) f32   (unprojected y, used for the final weighted sum)
    # mask_ref:(BB, 1,  L2p) f32   (1.0 = masked out)
    # wt_ref:  (Hp, Hp) bf16       (already transposed: out = in @ wt == in @ W.T)
    # b_ref:   (1, Hp) f32
    # out_ref: (BB, L1p, Hp) f32
    BB, L1p, Hp = x_ref.shape
    _, L2p, _ = y_ref.shape

    wt = wt_ref[...]                       # (Hp, Hp) bf16
    b = b_ref[...]                         # (1, Hp)  f32

    # Projection + ReLU; fold batch into the M dimension to fill the MXU.
    x2 = x_ref[...].reshape(BB * L1p, Hp)                         # bf16
    y2 = y_ref[...].astype(jnp.bfloat16).reshape(BB * L2p, Hp)    # bf16
    x_proj = jnp.maximum(
        jnp.dot(x2, wt, preferred_element_type=jnp.float32) + b, 0.0)
    y_proj = jnp.maximum(
        jnp.dot(y2, wt, preferred_element_type=jnp.float32) + b, 0.0)
    x_proj = x_proj.astype(jnp.bfloat16).reshape(BB, L1p, Hp)
    y_proj = y_proj.astype(jnp.bfloat16).reshape(BB, L2p, Hp)

    # Attention scores: batched "NT" matmul (contract last dims) -> no transpose.
    scores = lax.dot_general(
        x_proj, y_proj,
        dimension_numbers=(((2,), (2,)), ((0,), (0,))),
        preferred_element_type=jnp.float32)            # (BB, L1p, L2p)

    # Additive mask with a large finite negative (no NaN for fully-masked rows).
    scores = scores + mask_ref[...] * jnp.float32(-1e30)

    # Softmax over L2 in f32.
    m = jnp.max(scores, axis=-1, keepdims=True)
    e = jnp.exp(scores - m)
    denom = jnp.sum(e, axis=-1, keepdims=True)
    alpha = e * pl.reciprocal(denom, approx=True)      # (BB, L1p, L2p)

    # Weighted sum of the *unprojected* y (kept f32 for accuracy).
    matched = lax.dot_general(
        alpha, y_ref[...],
        dimension_numbers=(((2,), (1,)), ((0,), (0,))),
        preferred_element_type=jnp.float32)            # (BB, L1p, Hp)
    out_ref[...] = matched.astype(out_ref.dtype)


def seq_attn_match(x, y, y_mask, weight, bias, *, block_b=None):
    """x: (B, L1, H) f32; y: (B, L2, H) f32; y_mask: (B, L2) bool;
    weight: (H, H) f32 (nn.Linear convention); bias: (H,) f32.
    Returns (B, L1, H) f32."""
    B, L1, H = x.shape
    _, L2, _ = y.shape

    def rup(v, m):
        return ((v + m - 1) // m) * m

    Hp = rup(H, 128)          # lane-dense last dim
    L1p = rup(L1, 8)
    L2p = rup(L2, 8)

    if block_b is None:
        # Fill the MXU M dimension (~256 rows) without exceeding the batch.
        block_b = max(1, min(B, (256 + L1p - 1) // L1p))
    # Cap so per-step tiles (double-buffered by the pipeline) stay well under
    # the scoped VMEM limit on all generations (incl. v7x's 64 MiB physical).
    bytes_per_b = (L1p * Hp * 2          # x (bf16)
                   + L2p * Hp * 4        # y (f32)
                   + L2p * 4             # mask
                   + L1p * Hp * 4        # out
                   + L1p * L2p * 4)      # scores/alpha working set
    block_b = max(1, min(block_b, (8 << 20) // max(1, bytes_per_b)))
    Bp = rup(B, block_b)

    # Zero-padding is exact: padded W rows/cols and bias entries are zero, so
    # padded H channels stay 0; padded L2 rows are masked out; padded L1/B rows
    # are sliced away at the end.
    x_p = jnp.zeros((Bp, L1p, Hp), jnp.bfloat16).at[:B, :L1, :H].set(
        x.astype(jnp.bfloat16))
    y_p = jnp.zeros((Bp, L2p, Hp), jnp.float32).at[:B, :L2, :H].set(
        y.astype(jnp.float32))
    mask_p = jnp.ones((Bp, 1, L2p), jnp.float32).at[:B, 0, :L2].set(
        y_mask.astype(jnp.float32))
    wt_p = jnp.zeros((Hp, Hp), jnp.bfloat16).at[:H, :H].set(
        weight.T.astype(jnp.bfloat16))
    b_p = jnp.zeros((1, Hp), jnp.float32).at[0, :H].set(bias.astype(jnp.float32))

    grid = (Bp // block_b,)

    flops = 2 * Bp * (L1p * Hp * Hp + L2p * Hp * Hp + 2 * L1p * L2p * Hp)
    bytes_accessed = (x_p.size * 2 + y_p.size * 4 + mask_p.size * 4 +
                      wt_p.size * 2 + b_p.size * 4 + Bp * L1p * Hp * 4)
    cost = pl.CostEstimate(flops=flops,
                           transcendentals=Bp * L1p * L2p,
                           bytes_accessed=bytes_accessed)

    out_p = pl.pallas_call(
        _seq_attn_kernel,
        out_shape=jax.ShapeDtypeStruct((Bp, L1p, Hp), jnp.float32),
        grid_spec=pltpu.PrefetchScalarGridSpec(
            num_scalar_prefetch=0,
            grid=grid,
            in_specs=[
                pl.BlockSpec((block_b, L1p, Hp), lambda b: (b, 0, 0)),   # x
                pl.BlockSpec((block_b, L2p, Hp), lambda b: (b, 0, 0)),   # y
                pl.BlockSpec((block_b, 1, L2p), lambda b: (b, 0, 0)),    # mask
                pl.BlockSpec((Hp, Hp), lambda b: (0, 0)),                # W.T (shared)
                pl.BlockSpec((1, Hp), lambda b: (0, 0)),                 # bias (shared)
            ],
            out_specs=pl.BlockSpec((block_b, L1p, Hp), lambda b: (b, 0, 0)),
        ),
        compiler_params=pltpu.CompilerParams(
            dimension_semantics=("parallel",)),
        cost_estimate=cost,
    )(x_p, y_p, mask_p, wt_p, b_p)

    return out_p[:B, :L1, :H]


def _reference(x, y, y_mask, weight, bias):
    # Pure-JAX f32 reference reproducing the PyTorch forward.
    xp = jax.nn.relu(jnp.einsum("blh,oh->blo", x, weight) + bias)
    yp = jax.nn.relu(jnp.einsum("blh,oh->blo", y, weight) + bias)
    scores = jnp.einsum("bih,bjh->bij", xp, yp)
    scores = jnp.where(y_mask[:, None, :], -jnp.inf, scores)
    alpha = jax.nn.softmax(scores, axis=-1)
    return jnp.einsum("bij,bjh->bih", alpha, y)


if __name__ == "__main__":
    key = jax.random.PRNGKey(0)
    B, L1, L2, H = 2, 8, 8, 32

    kx, ky, kw, kb, km = jax.random.split(key, 5)
    x = jax.random.normal(kx, (B, L1, H), dtype=jnp.float32)
    y = jax.random.normal(ky, (B, L2, H), dtype=jnp.float32)
    bound = 1.0 / (H ** 0.5)
    weight = jax.random.uniform(kw, (H, H), minval=-bound, maxval=bound,
                                dtype=jnp.float32)
    bias = jax.random.uniform(kb, (H,), minval=-bound, maxval=bound,
                              dtype=jnp.float32)
    # Mask out the last two positions of y for each batch element (True = masked).
    y_mask = jnp.zeros((B, L2), dtype=bool).at[:, -2:].set(True)

    out = seq_attn_match(x, y, y_mask, weight, bias)
    out = jax.block_until_ready(out)

    ref = _reference(x, y, y_mask, weight, bias)
    assert out.shape == (B, L1, H)
    # bf16 matmul path + approx reciprocal -> relaxed (but still tight) tolerance.
    assert jnp.allclose(out, ref, atol=3e-2, rtol=3e-2), "mismatch vs reference"

    print("KERNEL_OK")
</pallas_src>

<mosaic_0001>
module attributes {stable_mosaic.version = 11 : i64} {
  func.func @_seq_attn_kernel(%arg0: i32, %arg1: memref<2x8x128xbf16, #tpu.memory_space<vmem>>, %arg2: memref<2x8x128xf32, #tpu.memory_space<vmem>>, %arg3: memref<2x1x8xf32, #tpu.memory_space<vmem>>, %arg4: memref<128x128xbf16, #tpu.memory_space<vmem>>, %arg5: memref<1x128xf32, #tpu.memory_space<vmem>>, %arg6: memref<2x8x128xf32, #tpu.memory_space<vmem>>) attributes {dimension_semantics = [#tpu.dimension_semantics<parallel>], iteration_bounds = array<i64: 1>, scalar_prefetch = 0 : i64, scratch_operands = 0 : i64, tpu.core_type = #tpu.core_type<tc>, window_params = [{transform_indices = @transform_0, window_bounds = array<i64: 2, 8, 128>}, {transform_indices = @transform_1, window_bounds = array<i64: 2, 8, 128>}, {transform_indices = @transform_2, window_bounds = array<i64: 2, 1, 8>}, {pipeline_mode = #tpu.pipeline_mode<synchronous>, transform_indices = @transform_3, window_bounds = array<i64: 128, 128>}, {pipeline_mode = #tpu.pipeline_mode<synchronous>, transform_indices = @transform_4, window_bounds = array<i64: 1, 128>}, {transform_indices = @transform_5, window_bounds = array<i64: 2, 8, 128>}]} {
    %c0 = arith.constant 0 : index
    %c0_0 = arith.constant 0 : index
    %0 = vector.load %arg4[%c0, %c0_0] : memref<128x128xbf16, #tpu.memory_space<vmem>>, vector<128x128xbf16>
    %c0_1 = arith.constant 0 : index
    %c0_2 = arith.constant 0 : index
    %1 = vector.load %arg5[%c0_1, %c0_2] : memref<1x128xf32, #tpu.memory_space<vmem>>, vector<1x128xf32>
    %c0_3 = arith.constant 0 : index
    %c0_4 = arith.constant 0 : index
    %c0_5 = arith.constant 0 : index
    %2 = vector.load %arg1[%c0_3, %c0_4, %c0_5] : memref<2x8x128xbf16, #tpu.memory_space<vmem>>, vector<2x8x128xbf16>
    %3 = vector.shape_cast %2 : vector<2x8x128xbf16> to vector<16x128xbf16>
    %c0_6 = arith.constant 0 : index
    %c0_7 = arith.constant 0 : index
    %c0_8 = arith.constant 0 : index
    %4 = vector.load %arg2[%c0_6, %c0_7, %c0_8] : memref<2x8x128xf32, #tpu.memory_space<vmem>>, vector<2x8x128xf32>
    %5 = arith.truncf %4 : vector<2x8x128xf32> to vector<2x8x128xbf16>
    %6 = vector.shape_cast %5 : vector<2x8x128xbf16> to vector<16x128xbf16>
    %cst = arith.constant dense<0.000000e+00> : vector<16x128xf32>
    %7 = tpu.matmul %3, %0, %cst {dimension_numbers = #tpu.dot_dimension_numbers<[1], [0], [0], [1], [0, 0, 1, 1], [], []>} : vector<16x128xbf16>, vector<128x128xbf16>, vector<16x128xf32> -> vector<16x128xf32>
    %8 = vector.broadcast %1 : vector<1x128xf32> to vector<16x128xf32>
    %9 = arith.addf %7, %8 : vector<16x128xf32>
    %cst_9 = arith.constant 0.000000e+00 : f32
    %10 = vector.broadcast %cst_9 : f32 to vector<16x128xf32>
    %11 = arith.maximumf %9, %10 : vector<16x128xf32>
    %cst_10 = arith.constant dense<0.000000e+00> : vector<16x128xf32>
    %12 = tpu.matmul %6, %0, %cst_10 {dimension_numbers = #tpu.dot_dimension_numbers<[1], [0], [0], [1], [0, 0, 1, 1], [], []>} : vector<16x128xbf16>, vector<128x128xbf16>, vector<16x128xf32> -> vector<16x128xf32>
    %13 = vector.broadcast %1 : vector<1x128xf32> to vector<16x128xf32>
    %14 = arith.addf %12, %13 : vector<16x128xf32>
    %cst_11 = arith.constant 0.000000e+00 : f32
    %15 = vector.broadcast %cst_11 : f32 to vector<16x128xf32>
    %16 = arith.maximumf %14, %15 : vector<16x128xf32>
    %17 = arith.truncf %11 : vector<16x128xf32> to vector<16x128xbf16>
    %18 = vector.shape_cast %17 : vector<16x128xbf16> to vector<2x8x128xbf16>
    %19 = arith.truncf %16 : vector<16x128xf32> to vector<16x128xbf16>
    %20 = vector.shape_cast %19 : vector<16x128xbf16> to vector<2x8x128xbf16>
    %cst_12 = arith.constant dense<0.000000e+00> : vector<2x8x8xf32>
    %21 = tpu.matmul %18, %20, %cst_12 {dimension_numbers = #tpu.dot_dimension_numbers<[2], [2], [1], [1], [0, 0, 0, 1, 1, 1], [0], [0]>} : vector<2x8x128xbf16>, vector<2x8x128xbf16>, vector<2x8x8xf32> -> vector<2x8x8xf32>
    %c0_13 = arith.constant 0 : index
    %c0_14 = arith.constant 0 : index
    %c0_15 = arith.constant 0 : index
    %22 = vector.load %arg3[%c0_13, %c0_14, %c0_15] : memref<2x1x8xf32, #tpu.memory_space<vmem>>, vector<2x1x8xf32>
    %cst_16 = arith.constant -1.000000e+30 : f32
    %23 = vector.broadcast %cst_16 : f32 to vector<2x1x8xf32>
    %24 = arith.mulf %22, %23 : vector<2x1x8xf32>
    %25 = vector.broadcast %24 : vector<2x1x8xf32> to vector<2x8x8xf32>
    %26 = arith.addf %21, %25 : vector<2x8x8xf32>
    %cst_17 = arith.constant dense<0xFF800000> : vector<2x8xf32>
    %27 = vector.multi_reduction <maximumf>, %26, %cst_17 [2] : vector<2x8x8xf32> to vector<2x8xf32>
    %28 = vector.shape_cast %27 : vector<2x8xf32> to vector<2x8x1xf32>
    %29 = vector.broadcast %28 : vector<2x8x1xf32> to vector<2x8x8xf32>
    %30 = arith.subf %26, %29 : vector<2x8x8xf32>
    %31 = math.exp %30 : vector<2x8x8xf32>
    %cst_18 = arith.constant dense<0.000000e+00> : vector<2x8xf32>
    %32 = vector.multi_reduction <add>, %31, %cst_18 [2] : vector<2x8x8xf32> to vector<2x8xf32>
    %33 = vector.shape_cast %32 : vector<2x8xf32> to vector<2x8x1xf32>
    %34 = tpu.reciprocal %33 {approx = true} : vector<2x8x1xf32> -> vector<2x8x1xf32>
    %35 = vector.broadcast %34 : vector<2x8x1xf32> to vector<2x8x8xf32>
    %36 = arith.mulf %31, %35 : vector<2x8x8xf32>
    %c0_19 = arith.constant 0 : index
    %c0_20 = arith.constant 0 : index
    %c0_21 = arith.constant 0 : index
    %37 = vector.load %arg2[%c0_19, %c0_20, %c0_21] : memref<2x8x128xf32, #tpu.memory_space<vmem>>, vector<2x8x128xf32>
    %cst_22 = arith.constant dense<0.000000e+00> : vector<2x8x128xf32>
    %38 = tpu.matmul %36, %37, %cst_22 {dimension_numbers = #tpu.dot_dimension_numbers<[2], [1], [1], [2], [0, 0, 0, 1, 1, 2], [0], [0]>} : vector<2x8x8xf32>, vector<2x8x128xf32>, vector<2x8x128xf32> -> vector<2x8x128xf32>
    %c0_23 = arith.constant 0 : index
    %c0_24 = arith.constant 0 : index
    %c0_25 = arith.constant 0 : index
    %39 = vector.load %arg6[%c0_23, %c0_24, %c0_25] : memref<2x8x128xf32, #tpu.memory_space<vmem>>, vector<2x8x128xf32>
    tpu.vector_store %arg6[%c0_23, %c0_24, %c0_25], %38 {strides = array<i32>} : memref<2x8x128xf32, #tpu.memory_space<vmem>>, vector<2x8x128xf32>,
    return
  }
  func.func @transform_0(%arg0: i32) -> (i32, i32, i32) {
    %c0_i32 = arith.constant 0 : i32
    %c0_i32_0 = arith.constant 0 : i32
    %c0_i32_1 = arith.constant 0 : i32
    return %arg0, %c0_i32, %c0_i32_0 : i32, i32, i32
  }
  func.func @transform_1(%arg0: i32) -> (i32, i32, i32) {
    %c0_i32 = arith.constant 0 : i32
    %c0_i32_0 = arith.constant 0 : i32
    %c0_i32_1 = arith.constant 0 : i32
    return %arg0, %c0_i32, %c0_i32_0 : i32, i32, i32
  }
  func.func @transform_2(%arg0: i32) -> (i32, i32, i32) {
    %c0_i32 = arith.constant 0 : i32
    %c0_i32_0 = arith.constant 0 : i32
    %c0_i32_1 = arith.constant 0 : i32
    return %arg0, %c0_i32, %c0_i32_0 : i32, i32, i32
  }
  func.func @transform_3(%arg0: i32) -> (i32, i32) {
    %c0_i32 = arith.constant 0 : i32
    %c0_i32_0 = arith.constant 0 : i32
    %c0_i32_1 = arith.constant 0 : i32
    return %c0_i32, %c0_i32_0 : i32, i32
  }
  func.func @transform_4(%arg0: i32) -> (i32, i32) {
    %c0_i32 = arith.constant 0 : i32
    %c0_i32_0 = arith.constant 0 : i32
    %c0_i32_1 = arith.constant 0 : i32
    return %c0_i32, %c0_i32_0 : i32, i32
  }
  func.func @transform_5(%arg0: i32) -> (i32, i32, i32) {
    %c0_i32 = arith.constant 0 : i32
    %c0_i32_0 = arith.constant 0 : i32
    %c0_i32_1 = arith.constant 0 : i32
    return %arg0, %c0_i32, %c0_i32_0 : i32, i32, i32
  }
}

</mosaic_0001>

<llo_original>
// kernel: tpu_custom_call.1
$region0: #{tpu_custom_call.1}
  #allocation0 [shape = 'u32[]', space=smem, size = 0x4, offset = 0x4, fixed_abs, tag = 'smem constant byte address 0x4 - core index']
  #allocation1 [shape = 'u32[144,128]{1,0:T(1,128)}', space=vmem, size = 0x12000, scoped, tag = 'internal scratch']
  %s0 = inlined_call_operand.hbm [shape: bf16[2,8,128], index: 0, kind: input, shape index: {}]
  %s1 = inlined_call_operand.hbm [shape: f32[2,8,128], index: 1, kind: input, shape index: {}]
  %s2 = inlined_call_operand.vmem [shape: f32[2,1,8], index: 2, kind: input, shape index: {}]
  %s3 = inlined_call_operand.hbm [shape: bf16[128,128], index: 3, kind: input, shape index: {}]
  %s4 = inlined_call_operand.vmem [shape: f32[1,128], index: 4, kind: input, shape index: {}]
  %s5 = inlined_call_operand.hbm [shape: f32[2,8,128], index: 5, kind: output, shape index: {}]
  %s6 = sld [smem:[#allocation0]]
  $region42: #{tpu_custom_call.1} parent=0
    _
  %s8 = ssub.s32 1, %s6
  %s9 = scalar_select 0, %s8, %s6
  $region1: #{tpu_custom_call.1} parent=0
    #allocation2 [shape = 'u8[4096]{0}', space=vmem, size = 0x1000, scoped, tag = 'input window, operand 0, single buffered']
    #allocation3 [shape = 's32[1]{0}', space=sflag, size = 0x4, scoped, tag = 'scoped memory for tpu_custom_call.1']
    #allocation4 [shape = 's32[1]{0}', space=sflag, size = 0x4, scoped, tag = 'scoped memory for tpu_custom_call.1']
    #allocation5 [shape = 'u8[8192]{0}', space=vmem, size = 0x2000, scoped, tag = 'input window, operand 1, single buffered']
    #allocation6 [shape = 's32[1]{0}', space=sflag, size = 0x4, scoped, tag = 'scoped memory for tpu_custom_call.1']
    #allocation7 [shape = 'u8[32768]{0}', space=vmem, size = 0x8000, scoped, tag = 'input window, operand 3, single buffered']
    #allocation8 [shape = 'u8[8192]{0}', space=vmem, size = 0x2000, scoped, tag = 'output window, operand 0, single buffered']
    %10 = vsyncpa [#allocation3], 0
    %11 = vsyncpa [#allocation6], 0
    %12 = vsyncpa [#allocation4], 0
    // Predicated region
    $region2: #{tpu_custom_call.1} parent=1 // pred_check
      _
    $region3: #{tpu_custom_call.1} parent=1 // pred_check_branch
      %14 = sbr.rel (0) target = $region5
    $region4: #{tpu_custom_call.1} parent=1 // pred_region
      %s16 = ssub.s32 128, 128
      %17 = vsyncadd [#allocation3], %s16
      %s18 = sshll.u32 [#allocation2], 4
      %s19 = int_to_ptr.vmem [resolvable:$true] %s18
      %24 = dma.hbm_to_vmem [thread:$0]  %s0, 128, %s19, [#allocation3], 64, 64, 4
    $region5: #{tpu_custom_call.1} parent=1 // pred_fallthru
      _
    // Predicated region
    $region6: #{tpu_custom_call.1} parent=1 // pred_check
      _
    $region7: #{tpu_custom_call.1} parent=1 // pred_check_branch
      %26 = sbr.rel (0) target = $region9
    $region8: #{tpu_custom_call.1} parent=1 // pred_region
      %s28 = ssub.s32 256, 256
      %29 = vsyncadd [#allocation6], %s28
      %s30 = sshll.u32 [#allocation5], 4
      %s31 = int_to_ptr.vmem [resolvable:$true] %s30
      %36 = dma.hbm_to_vmem [thread:$0]  %s1, 256, %s31, [#allocation6], 128, 128, 8
    $region9: #{tpu_custom_call.1} parent=1 // pred_fallthru
      _
    // Predicated region
    $region10: #{tpu_custom_call.1} parent=1 // pred_check
      _
    $region11: #{tpu_custom_call.1} parent=1 // pred_check_branch
      %38 = sbr.rel (0) target = $region13
    $region12: #{tpu_custom_call.1} parent=1 // pred_region
      _
    $region13: #{tpu_custom_call.1} parent=1 // pred_fallthru
      _
    // Predicated region
    $region14: #{tpu_custom_call.1} parent=1 // pred_check
      _
    $region15: #{tpu_custom_call.1} parent=1 // pred_check_branch
      %40 = sbr.rel (0) target = $region17
    $region16: #{tpu_custom_call.1} parent=1 // pred_region
      %s42 = ssub.s32 1024, 1024
      %43 = vsyncadd [#allocation6], %s42
      %s44 = sshll.u32 [#allocation7], 4
      %s45 = int_to_ptr.vmem [resolvable:$true] %s44
      %50 = dma.hbm_to_vmem [thread:$0]  %s3, 1024, %s45, [#allocation6], 64, 64, 4
    $region17: #{tpu_custom_call.1} parent=1 // pred_fallthru
      _
    // Predicated region
    $region18: #{tpu_custom_call.1} parent=1 // pred_check
      _
    $region19: #{tpu_custom_call.1} parent=1 // pred_check_branch
      %52 = sbr.rel (0) target = $region21
    $region20: #{tpu_custom_call.1} parent=1 // pred_region
      _
    $region21: #{tpu_custom_call.1} parent=1 // pred_fallthru
      _
    // Predicated region
    $region22: #{tpu_custom_call.1} parent=1 // pred_check
      _
    $region23: #{tpu_custom_call.1} parent=1 // pred_check_branch
      %54 = sbr.rel (0) target = $region25
    $region24: #{tpu_custom_call.1} parent=1 // pred_region
      %55 = dma.done [#allocation3], 128
    $region25: #{tpu_custom_call.1} parent=1 // pred_fallthru
      _
    // Predicated region
    $region26: #{tpu_custom_call.1} parent=1 // pred_check
      _
    $region27: #{tpu_custom_call.1} parent=1 // pred_check_branch
      %57 = sbr.rel (0) target = $region29
    $region28: #{tpu_custom_call.1} parent=1 // pred_region
      %58 = dma.done [#allocation6], 256
    $region29: #{tpu_custom_call.1} parent=1 // pred_fallthru
      _
    // Predicated region
    $region30: #{tpu_custom_call.1} parent=1 // pred_check
      _
    $region31: #{tpu_custom_call.1} parent=1 // pred_check_branch
      %60 = sbr.rel (0) target = $region33
    $region32: #{tpu_custom_call.1} parent=1 // pred_region
      %61 = dma.done [#allocation6], 1024
    $region33: #{tpu_custom_call.1} parent=1 // pred_fallthru
      _
    %v63 = vld [vmem:[#allocation7] sm:$0xf]
    %v64 = vld [vmem:[#allocation7 + $0x4] sm:$0xf]
    %v65 = vld [vmem:[#allocation7 + $0x8] sm:$0xf]
    %v66 = vld [vmem:[#allocation7 + $0xc] sm:$0xf]
    %v67 = vld [vmem:[#allocation7 + $0x10] sm:$0xf]
    %v68 = vld [vmem:[#allocation7 + $0x14] sm:$0xf]
    %v69 = vld [vmem:[#allocation7 + $0x18] sm:$0xf]
    %v70 = vld [vmem:[#allocation7 + $0x1c] sm:$0xf]
    %v71 = vld [vmem:[#allocation7 + $0x20] sm:$0xf]
    %v72 = vld [vmem:[#allocation7 + $0x24] sm:$0xf]
    %v73 = vld [vmem:[#allocation7 + $0x28] sm:$0xf]
    %v74 = vld [vmem:[#allocation7 + $0x2c] sm:$0xf]
    %v75 = vld [vmem:[#allocation7 + $0x30] sm:$0xf]
    %v76 = vld [vmem:[#allocation7 + $0x34] sm:$0xf]
    %v77 = vld [vmem:[#allocation7 + $0x38] sm:$0xf]
    %v78 = vld [vmem:[#allocation7 + $0x3c] sm:$0xf]
    %v79 = vld [vmem:[%s4] sm:$0x1]
    %v80 = vld [vmem:[#allocation2] sm:$0xf]
    %v81 = vld [vmem:[#allocation2 + $0x4] sm:$0xf]
    %v82 = vld [vmem:[#allocation5] sm:$0xff]
    %v83 = vld [vmem:[#allocation5 + $0x8] sm:$0xff]
    %v84 = vpack.c.bf16 %v82, %v82
    %v85 = vpack.c.bf16 %v83, %v83
    %v87 = vlaneseq
    %v88 = vshrl.u32 %v87, 7
    %v89 = vsub.s32 0, %v88
    %v90 = vrot.slane %v79, %v89
    %v94 = vunpack.c.l.b16 %v80
    %v95 = vunpack.c.l.b16 %v81
    %v96 = vpack.c.b16 %v95, %v94
    %v114 = vunpack.c.l.b16 %v63
    %v115 = vunpack.c.l.b16 %v64
    %v116 = vunpack.c.l.b16 %v65
    %v117 = vunpack.c.l.b16 %v66
    %v118 = vunpack.c.l.b16 %v67
    %v119 = vunpack.c.l.b16 %v68
    %v120 = vunpack.c.l.b16 %v69
    %v121 = vunpack.c.l.b16 %v70
    %v122 = vunpack.c.l.b16 %v71
    %v123 = vunpack.c.l.b16 %v72
    %v124 = vunpack.c.l.b16 %v73
    %v125 = vunpack.c.l.b16 %v74
    %v126 = vunpack.c.l.b16 %v75
    %v127 = vunpack.c.l.b16 %v76
    %v128 = vunpack.c.l.b16 %v77
    %v129 = vunpack.c.l.b16 %v78
    %v130 = vpack.c.b16 %v115, %v114
    %v131 = vpack.c.b16 %v117, %v116
    %v132 = vpack.c.b16 %v119, %v118
    %v133 = vpack.c.b16 %v121, %v120
    %v134 = vpack.c.b16 %v123, %v122
    %v135 = vpack.c.b16 %v125, %v124
    %v136 = vpack.c.b16 %v127, %v126
    %v137 = vpack.c.b16 %v129, %v128
    %146 = vmatprep.subr.bf16.mxu0 0
    %147 = vmatpush1.bf16.msra.mxu0 %v130
    %148 = vmatprep.subr.bf16.mxu0 0
    %149 = vmatpush1.bf16.msra.mxu0 %v131
    %150 = vmatprep.subr.bf16.mxu0 0
    %151 = vmatpush1.bf16.msra.mxu0 %v132
    %152 = vmatprep.subr.bf16.mxu0 0
    %153 = vmatpush1.bf16.msra.mxu0 %v133
    %154 = vmatprep.subr.bf16.mxu0 0
    %155 = vmatpush1.bf16.msra.mxu0 %v134
    %156 = vmatprep.subr.bf16.mxu0 0
    %157 = vmatpush1.bf16.msra.mxu0 %v135
    %158 = vmatprep.subr.bf16.mxu0 0
    %159 = vmatpush1.bf16.msra.mxu0 %v136
    %160 = vmatprep.subr.bf16.mxu0 0
    %161 = vmatpush1.bf16.msra.mxu0 %v137
    %162 = vmatprep.subr.bf16.mxu0 0
    %163 = vmatpush1.bf16.msra.mxu0 0
    %164 = vmatprep.subr.bf16.mxu0 0
    %165 = vmatpush1.bf16.msra.mxu0 0
    %166 = vmatprep.subr.bf16.mxu0 0
    %167 = vmatpush1.bf16.msra.mxu0 0
    %168 = vmatprep.subr.bf16.mxu0 0
    %169 = vmatpush1.bf16.msra.mxu0 0
    %170 = vmatprep.subr.bf16.mxu0 0
    %171 = vmatpush1.bf16.msra.mxu0 0
    %172 = vmatprep.subr.bf16.mxu0 0
    %173 = vmatpush1.bf16.msra.mxu0 0
    %174 = vmatprep.subr.bf16.mxu0 0
    %175 = vmatpush1.bf16.msra.mxu0 0
    %176 = vmatprep.subr.bf16.mxu0 0
    %177 = vmatpush1.bf16.msra.mxu0 0
    %178 = vmatprep.mubr.bf16.mxu0 0
    %179 = vmatmul.mubr.bf16.gmra.mrb[0].mxu0 %v96
    %v180 = vpop.f32.mrb[0].mxu0
    %v181 = vadd.f32 %v90, %v180
    %v182 = vpop.f32.mrb[0].mxu0
    %v183 = vpop.f32.mrb[0].mxu0
    %v184 = vadd.f32 %v90, %v183
    %v185 = vpop.f32.mrb[0].mxu0
    %186 = vdwg.mxu0
    %v187 = vmax.f32 %v181, 0.0
    %v188 = vmax.f32 %v184, 0.0
    %v191 = vunpack.c.l.b16 %v84
    %v192 = vunpack.c.l.b16 %v85
    %v193 = vpack.c.b16 %v192, %v191
    %195 = vmatprep.subr.bf16.mxu0 0
    %196 = vmatpush1.bf16.msra.mxu0 %v130
    %197 = vmatprep.subr.bf16.mxu0 0
    %198 = vmatpush1.bf16.msra.mxu0 %v131
    %199 = vmatprep.subr.bf16.mxu0 0
    %200 = vmatpush1.bf16.msra.mxu0 %v132
    %201 = vmatprep.subr.bf16.mxu0 0
    %202 = vmatpush1.bf16.msra.mxu0 %v133
    %203 = vmatprep.subr.bf16.mxu0 0
    %204 = vmatpush1.bf16.msra.mxu0 %v134
    %205 = vmatprep.subr.bf16.mxu0 0
    %206 = vmatpush1.bf16.msra.mxu0 %v135
    %207 = vmatprep.subr.bf16.mxu0 0
    %208 = vmatpush1.bf16.msra.mxu0 %v136
    %209 = vmatprep.subr.bf16.mxu0 0
    %210 = vmatpush1.bf16.msra.mxu0 %v137
    %211 = vmatprep.subr.bf16.mxu0 0
    %212 = vmatpush1.bf16.msra.mxu0 0
    %213 = vmatprep.subr.bf16.mxu0 0
    %214 = vmatpush1.bf16.msra.mxu0 0
    %215 = vmatprep.subr.bf16.mxu0 0
    %216 = vmatpush1.bf16.msra.mxu0 0
    %217 = vmatprep.subr.bf16.mxu0 0
    %218 = vmatpush1.bf16.msra.mxu0 0
    %219 = vmatprep.subr.bf16.mxu0 0
    %220 = vmatpush1.bf16.msra.mxu0 0
    %221 = vmatprep.subr.bf16.mxu0 0
    %222 = vmatpush1.bf16.msra.mxu0 0
    %223 = vmatprep.subr.bf16.mxu0 0
    %224 = vmatpush1.bf16.msra.mxu0 0
    %225 = vmatprep.subr.bf16.mxu0 0
    %226 = vmatpush1.bf16.msra.mxu0 0
    %227 = vmatprep.mubr.bf16.mxu0 0
    %228 = vmatmul.mubr.bf16.gmra.mrb[0].mxu0 %v193
    %v229 = vpop.f32.mrb[0].mxu0
    %v230 = vadd.f32 %v90, %v229
    %v231 = vpop.f32.mrb[0].mxu0
    %v232 = vpop.f32.mrb[0].mxu0
    %v233 = vadd.f32 %v90, %v232
    %v234 = vpop.f32.mrb[0].mxu0
    %235 = vdwg.mxu0
    %v236 = vmax.f32 %v230, 0.0
    %v237 = vmax.f32 %v233, 0.0
    %v238 = vpack.c.bf16 %v188, %v187
    %v240 = vunpack.c.l.b16 %v238
    %v241 = vunpack.c.h.b16 %v238
    %v242 = vpack.c.b16 %v240, %v240
    %v243 = vpack.c.b16 %v241, %v241
    %v246 = vpack.c.bf16 %v237, %v236
    %v248 = vunpack.c.l.b16 %v246
    %v249 = vunpack.c.h.b16 %v246
    %v250 = vpack.c.b16 %v248, %v248
    %v251 = vpack.c.b16 %v249, %v249
    %v254 = vld [vmem:[%s2] sm:$0x1]
    %v255 = vld [vmem:[%s2 + $0x1] sm:$0x1]
    %v256 = vmul.f32 %v254, -1e+30
    %v257 = vmul.f32 %v255, -1e+30
    %v260 = vlaneseq
    %v261 = vshrl.u32 %v260, 7
    %v262 = vsub.s32 0, %v261
    %v263 = vrot.slane %v256, %v262
    %v264 = vlaneseq
    %v265 = vshrl.u32 %v264, 7
    %v266 = vsub.s32 0, %v265
    %v267 = vrot.slane %v257, %v266
    %270 = vmatprep.subr.bf16.mxu0 0
    %271 = vmatpush1.bf16.xpose.msra.mxu0 %v250
    %272 = vmatprep.subr.bf16.mxu0 0
    %273 = vmatpush1.bf16.xpose.msra.mxu0 0
    %274 = vmatprep.subr.bf16.mxu0 0
    %275 = vmatpush1.bf16.xpose.msra.mxu0 0
    %276 = vmatprep.subr.bf16.mxu0 0
    %277 = vmatpush1.bf16.xpose.msra.mxu0 0
    %278 = vmatprep.subr.bf16.mxu0 0
    %279 = vmatpush1.bf16.xpose.msra.mxu0 0
    %280 = vmatprep.subr.bf16.mxu0 0
    %281 = vmatpush1.bf16.xpose.msra.mxu0 0
    %282 = vmatprep.subr.bf16.mxu0 0
    %283 = vmatpush1.bf16.xpose.msra.mxu0 0
    %284 = vmatprep.subr.bf16.mxu0 0
    %285 = vmatpush1.bf16.xpose.msra.mxu0 0
    %286 = vmatprep.subr.bf16.mxu0 0
    %287 = vmatpush1.bf16.xpose.msra.mxu0 0
    %288 = vmatprep.subr.bf16.mxu0 0
    %289 = vmatpush1.bf16.xpose.msra.mxu0 0
    %290 = vmatprep.subr.bf16.mxu0 0
    %291 = vmatpush1.bf16.xpose.msra.mxu0 0
    %292 = vmatprep.subr.bf16.mxu0 0
    %293 = vmatpush1.bf16.xpose.msra.mxu0 0
    %294 = vmatprep.subr.bf16.mxu0 0
    %295 = vmatpush1.bf16.xpose.msra.mxu0 0
    %296 = vmatprep.subr.bf16.mxu0 0
    %297 = vmatpush1.bf16.xpose.msra.mxu0 0
    %298 = vmatprep.subr.bf16.mxu0 0
    %299 = vmatpush1.bf16.xpose.msra.mxu0 0
    %300 = vmatprep.subr.bf16.mxu0 0
    %301 = vmatpush1.bf16.xpose.msra.mxu0 0
    %302 = vmatprep.mubr.bf16.mxu0 0
    %303 = vmatmul.mubr.bf16.gmra.mrb[0].mxu0 %v242
    %v304 = vpop.f32.mrb[0].mxu0
    %v305 = vadd.f32 %v263, %v304
    %v306 = vpop.f32.mrb[0].mxu0
    %v307 = vpop.f32.mrb[0].mxu0
    %v308 = vpop.f32.mrb[0].mxu0
    %309 = vdwg.mxu0
    %310 = vmatprep.subr.bf16.mxu0 0
    %311 = vmatpush1.bf16.xpose.msra.mxu0 %v251
    %312 = vmatprep.subr.bf16.mxu0 0
    %313 = vmatpush1.bf16.xpose.msra.mxu0 0
    %314 = vmatprep.subr.bf16.mxu0 0
    %315 = vmatpush1.bf16.xpose.msra.mxu0 0
    %316 = vmatprep.subr.bf16.mxu0 0
    %317 = vmatpush1.bf16.xpose.msra.mxu0 0
    %318 = vmatprep.subr.bf16.mxu0 0
    %319 = vmatpush1.bf16.xpose.msra.mxu0 0
    %320 = vmatprep.subr.bf16.mxu0 0
    %321 = vmatpush1.bf16.xpose.msra.mxu0 0
    %322 = vmatprep.subr.bf16.mxu0 0
    %323 = vmatpush1.bf16.xpose.msra.mxu0 0
    %324 = vmatprep.subr.bf16.mxu0 0
    %325 = vmatpush1.bf16.xpose.msra.mxu0 0
    %326 = vmatprep.subr.bf16.mxu0 0
    %327 = vmatpush1.bf16.xpose.msra.mxu0 0
    %328 = vmatprep.subr.bf16.mxu0 0
    %329 = vmatpush1.bf16.xpose.msra.mxu0 0
    %330 = vmatprep.subr.bf16.mxu0 0
    %331 = vmatpush1.bf16.xpose.msra.mxu0 0
    %332 = vmatprep.subr.bf16.mxu0 0
    %333 = vmatpush1.bf16.xpose.msra.mxu0 0
    %334 = vmatprep.subr.bf16.mxu0 0
    %335 = vmatpush1.bf16.xpose.msra.mxu0 0
    %336 = vmatprep.subr.bf16.mxu0 0
    %337 = vmatpush1.bf16.xpose.msra.mxu0 0
    %338 = vmatprep.subr.bf16.mxu0 0
    %339 = vmatpush1.bf16.xpose.msra.mxu0 0
    %340 = vmatprep.subr.bf16.mxu0 0
    %341 = vmatpush1.bf16.xpose.msra.mxu0 0
    %342 = vmatprep.mubr.bf16.mxu0 0
    %343 = vmatmul.mubr.bf16.gmra.mrb[0].mxu0 %v243
    %v344 = vpop.f32.mrb[0].mxu0
    %v345 = vadd.f32 %v267, %v344
    %v346 = vpop.f32.mrb[0].mxu0
    %v347 = vpop.f32.mrb[0].mxu0
    %v348 = vpop.f32.mrb[0].mxu0
    %349 = vdwg.mxu0
    %vm350 = vcmask 64512
    %v351 = vsel %vm350, %v305, -inf
    %352 = vmax.xlane.f32.xlu0 %v351
    %v353 = vpop.xlane.xlu0 %352
    %v354 = vsel %vm350, %v345, -inf
    %355 = vmax.xlane.f32.xlu0 %v354
    %v356 = vpop.xlane.xlu0 %355
    %v357 = vsub.f32 %v305, %v353
    %v358 = vsub.f32 %v345, %v356
    %v359 = vmul.f32 %v357, 1.442695
    %v360 = vpow.pop %v359
    %v361 = vmul.f32 %v358, 1.442695
    %v362 = vpow.pop %v361
    %v363 = vsel %vm350, %v360, 0.0
    %364 = vadd.xlane.f32.xlu0 %v363
    %v365 = vpop.xlane.xlu0 %364
    %v366 = vsel %vm350, %v362, 0.0
    %367 = vadd.xlane.f32.xlu0 %v366
    %v368 = vpop.xlane.xlu0 %367
    %v369 = vrcp.pop %v365
    %v370 = vrcp.pop %v368
    %v371 = vmul.f32 %v360, %v369
    %v372 = vmul.f32 %v362, %v370
    %v374 = vsel %vm350, %v371, 0
    %376 = vmatprep.subr.mxu0 0.0
    %377 = vmatpush1.msra.mxu0 %v82
    %378 = vmatprep.subr.mxu0 0.0
    %379 = vmatpush1.msra.mxu0 0.0
    %380 = vmatprep.subr.mxu0 0.0
    %381 = vmatpush1.msra.mxu0 0.0
    %382 = vmatprep.subr.mxu0 0.0
    %383 = vmatpush1.msra.mxu0 0.0
    %384 = vmatprep.subr.mxu0 0.0
    %385 = vmatpush1.msra.mxu0 0.0
    %386 = vmatprep.subr.mxu0 0.0
    %387 = vmatpush1.msra.mxu0 0.0
    %388 = vmatprep.subr.mxu0 0.0
    %389 = vmatpush1.msra.mxu0 0.0
    %390 = vmatprep.subr.mxu0 0.0
    %391 = vmatpush1.msra.mxu0 0.0
    %392 = vmatprep.subr.mxu0 0.0
    %393 = vmatpush1.msra.mxu0 0.0
    %394 = vmatprep.subr.mxu0 0.0
    %395 = vmatpush1.msra.mxu0 0.0
    %396 = vmatprep.subr.mxu0 0.0
    %397 = vmatpush1.msra.mxu0 0.0
    %398 = vmatprep.subr.mxu0 0.0
    %399 = vmatpush1.msra.mxu0 0.0
    %400 = vmatprep.subr.mxu0 0.0
    %401 = vmatpush1.msra.mxu0 0.0
    %402 = vmatprep.subr.mxu0 0.0
    %403 = vmatpush1.msra.mxu0 0.0
    %404 = vmatprep.subr.mxu0 0.0
    %405 = vmatpush1.msra.mxu0 0.0
    %406 = vmatprep.subr.mxu0 0.0
    %407 = vmatpush1.msra.mxu0 0.0
    %408 = vmatprep.subr.mxu0 0.0
    %409 = vmatpush1.msra.mxu0 0.0
    %410 = vmatprep.subr.mxu0 0.0
    %411 = vmatpush1.msra.mxu0 0.0
    %412 = vmatprep.subr.mxu0 0.0
    %413 = vmatpush1.msra.mxu0 0.0
    %414 = vmatprep.subr.mxu0 0.0
    %415 = vmatpush1.msra.mxu0 0.0
    %416 = vmatprep.subr.mxu0 0.0
    %417 = vmatpush1.msra.mxu0 0.0
    %418 = vmatprep.subr.mxu0 0.0
    %419 = vmatpush1.msra.mxu0 0.0
    %420 = vmatprep.subr.mxu0 0.0
    %421 = vmatpush1.msra.mxu0 0.0
    %422 = vmatprep.subr.mxu0 0.0
    %423 = vmatpush1.msra.mxu0 0.0
    %424 = vmatprep.subr.mxu0 0.0
    %425 = vmatpush1.msra.mxu0 0.0
    %426 = vmatprep.subr.mxu0 0.0
    %427 = vmatpush1.msra.mxu0 0.0
    %428 = vmatprep.subr.mxu0 0.0
    %429 = vmatpush1.msra.mxu0 0.0
    %430 = vmatprep.subr.mxu0 0.0
    %431 = vmatpush1.msra.mxu0 0.0
    %432 = vmatprep.subr.mxu0 0.0
    %433 = vmatpush1.msra.mxu0 0.0
    %434 = vmatprep.subr.mxu0 0.0
    %435 = vmatpush1.msra.mxu0 0.0
    %436 = vmatprep.subr.mxu0 0.0
    %437 = vmatpush1.msra.mxu0 0.0
    %438 = vmatprep.subr.mxu0 0.0
    %439 = vmatpush1.msra.mxu0 0.0
    %440 = vmatprep.mubr.f32.mxu0 0.0
    %441 = vmatmul.mubr.f32.gmra.mrb[0].mxu0 %v374
    %v442 = vpop.f32.mrb[0].mxu0
    %v443 = vadd.f32 0.0, %v442
    %v444 = vpop.f32.mrb[0].mxu0
    %445 = vdwg.mxu0
    %v447 = vsel %vm350, %v372, 0
    %449 = vmatprep.subr.mxu0 0.0
    %450 = vmatpush1.msra.mxu0 %v83
    %451 = vmatprep.subr.mxu0 0.0
    %452 = vmatpush1.msra.mxu0 0.0
    %453 = vmatprep.subr.mxu0 0.0
    %454 = vmatpush1.msra.mxu0 0.0
    %455 = vmatprep.subr.mxu0 0.0
    %456 = vmatpush1.msra.mxu0 0.0
    %457 = vmatprep.subr.mxu0 0.0
    %458 = vmatpush1.msra.mxu0 0.0
    %459 = vmatprep.subr.mxu0 0.0
    %460 = vmatpush1.msra.mxu0 0.0
    %461 = vmatprep.subr.mxu0 0.0
    %462 = vmatpush1.msra.mxu0 0.0
    %463 = vmatprep.subr.mxu0 0.0
    %464 = vmatpush1.msra.mxu0 0.0
    %465 = vmatprep.subr.mxu0 0.0
    %466 = vmatpush1.msra.mxu0 0.0
    %467 = vmatprep.subr.mxu0 0.0
    %468 = vmatpush1.msra.mxu0 0.0
    %469 = vmatprep.subr.mxu0 0.0
    %470 = vmatpush1.msra.mxu0 0.0
    %471 = vmatprep.subr.mxu0 0.0
    %472 = vmatpush1.msra.mxu0 0.0
    %473 = vmatprep.subr.mxu0 0.0
    %474 = vmatpush1.msra.mxu0 0.0
    %475 = vmatprep.subr.mxu0 0.0
    %476 = vmatpush1.msra.mxu0 0.0
    %477 = vmatprep.subr.mxu0 0.0
    %478 = vmatpush1.msra.mxu0 0.0
    %479 = vmatprep.subr.mxu0 0.0
    %480 = vmatpush1.msra.mxu0 0.0
    %481 = vmatprep.subr.mxu0 0.0
    %482 = vmatpush1.msra.mxu0 0.0
    %483 = vmatprep.subr.mxu0 0.0
    %484 = vmatpush1.msra.mxu0 0.0
    %485 = vmatprep.subr.mxu0 0.0
    %486 = vmatpush1.msra.mxu0 0.0
    %487 = vmatprep.subr.mxu0 0.0
    %488 = vmatpush1.msra.mxu0 0.0
    %489 = vmatprep.subr.mxu0 0.0
    %490 = vmatpush1.msra.mxu0 0.0
    %491 = vmatprep.subr.mxu0 0.0
    %492 = vmatpush1.msra.mxu0 0.0
    %493 = vmatprep.subr.mxu0 0.0
    %494 = vmatpush1.msra.mxu0 0.0
    %495 = vmatprep.subr.mxu0 0.0
    %496 = vmatpush1.msra.mxu0 0.0
    %497 = vmatprep.subr.mxu0 0.0
    %498 = vmatpush1.msra.mxu0 0.0
    %499 = vmatprep.subr.mxu0 0.0
    %500 = vmatpush1.msra.mxu0 0.0
    %501 = vmatprep.subr.mxu0 0.0
    %502 = vmatpush1.msra.mxu0 0.0
    %503 = vmatprep.subr.mxu0 0.0
    %504 = vmatpush1.msra.mxu0 0.0
    %505 = vmatprep.subr.mxu0 0.0
    %506 = vmatpush1.msra.mxu0 0.0
    %507 = vmatprep.subr.mxu0 0.0
    %508 = vmatpush1.msra.mxu0 0.0
    %509 = vmatprep.subr.mxu0 0.0
    %510 = vmatpush1.msra.mxu0 0.0
    %511 = vmatprep.subr.mxu0 0.0
    %512 = vmatpush1.msra.mxu0 0.0
    %513 = vmatprep.mubr.f32.mxu0 0.0
    %514 = vmatmul.mubr.f32.gmra.mrb[0].mxu0 %v447
    %v515 = vpop.f32.mrb[0].mxu0
    %v516 = vadd.f32 0.0, %v515
    %v517 = vpop.f32.mrb[0].mxu0
    %518 = vdwg.mxu0
    %519 = vst [vmem:[#allocation8] sm:$0xff] %v443
    %520 = vst [vmem:[#allocation8 + $0x8] sm:$0xff] %v516
    // Predicated region
    $region34: #{tpu_custom_call.1} parent=1 // pred_check
      _
    $region35: #{tpu_custom_call.1} parent=1 // pred_check_branch
      %522 = sbr.rel (0) target = $region37
    $region36: #{tpu_custom_call.1} parent=1 // pred_region
      %s524 = ssub.s32 256, 256
      %525 = vsyncadd [#allocation4], %s524
      %s526 = sshll.u32 [#allocation8], 4
      %s527 = int_to_ptr.vmem [resolvable:$true] %s526
      %532 = dma.vmem_to_hbm [thread:$0]  %s527, 256, %s5, [#allocation4], 128, 128, 8
    $region37: #{tpu_custom_call.1} parent=1 // pred_fallthru
      _
    // Predicated region
    $region38: #{tpu_custom_call.1} parent=1 // pred_check
      _
    $region39: #{tpu_custom_call.1} parent=1 // pred_check_branch
      %534 = sbr.rel (0) target = $region41
    $region40: #{tpu_custom_call.1} parent=1 // pred_region
      %535 = dma.done [#allocation4], 256
    $region41: #{tpu_custom_call.1} parent=1 // pred_fallthru
      _
    %536 = vsyncpa [#allocation3], 1
    %537 = vsyncpa [#allocation6], 1
    %538 = vsyncpa [#allocation4], 1

</llo_original>
